<compile_context>
chip_gen: v7x
topology: tpu7x:2x2x1
jax: 0.10.0
libtpu: 0.0.40
codegen_flags: <defaults>
</compile_context>

<pallas_src>
import functools
from typing import NamedTuple

import numpy as np
import jax
import jax.numpy as jnp
from jax.experimental import pallas as pl
from jax.experimental.pallas import tpu as pltpu

_LANE = 128
_SUBLANE = 8


def _round_up(x, m):
    return (x + m - 1) // m * m


def _apply_act(y, act):
    if act == "tanh":
        return jnp.tanh(y)
    if act == "relu":
        return jnp.maximum(y, 0.0)
    if act == "identity":
        return y
    raise ValueError(f"unknown activation: {act}")


class _LayerPlan(NamedTuple):
    is_skip: bool
    dp_out: int        # padded output width of this layer
    hist_end_in: int   # slab lanes feeding the skip matmul (-1 if not skip)
    ckpt_off: int      # slab offset for this layer's checkpoint (-1 if not stored)
    store_ckpt: bool   # True iff a LATER skip layer reads this checkpoint
    bias_off: int      # lane offset of this layer's bias in the packed bias row


# ---------------------------------------------------------------------------
# Fused kernel: whole network in one pallas_call
# ---------------------------------------------------------------------------
def _fused_densenet_kernel(*refs, plan, acts, dp_in, store_input):
    # refs = [x, (w[, ws_stacked]) per layer ..., bias_packed, out, slab]
    n_w = sum(2 if m.is_skip else 1 for m in plan)
    x_ref = refs[0]
    w_refs = refs[1:1 + n_w]
    b_ref = refs[1 + n_w]
    o_ref = refs[2 + n_w]
    slab = refs[3 + n_w]          # VMEM scratch: x_history checkpoints, lane-packed

    x = x_ref[...]                # f32
    if store_input:               # only if some skip layer reads x_history[0]
        slab[:, 0:dp_in] = x.astype(slab.dtype)

    wi = 0
    for li, meta in enumerate(plan):
        w = w_refs[wi][...]
        wi += 1
        # Matmul operands in compute dtype (f32 or bf16); accumulate in f32.
        y = jnp.dot(x.astype(w.dtype), w, preferred_element_type=jnp.float32)
        if meta.is_skip:
            ws = w_refs[wi][...]  # K-stacked [Ws_{0->d}; Ws_{1->d}; ...] (padded)
            wi += 1
            y = y + jnp.dot(slab[:, 0:meta.hist_end_in], ws,
                            preferred_element_type=jnp.float32)
        # Bias add + activation in f32.  NOTE: padded batch rows also receive
        # bias+activation and write nonzero values into the slab/output; this
        # is harmless because rows are independent and sliced off at [:B].
        y = y + b_ref[:, meta.bias_off:meta.bias_off + meta.dp_out]
        x = _apply_act(y, acts[li])
        if meta.store_ckpt:       # skip dead checkpoints (e.g. last skip layer)
            slab[:, meta.ckpt_off:meta.ckpt_off + meta.dp_out] = x.astype(slab.dtype)
    o_ref[...] = x.astype(o_ref.dtype)


# ---------------------------------------------------------------------------
# One-time parameter preparation
# ---------------------------------------------------------------------------
def prepare_fused_params(params, n_input, n_hidden_list, skip,
                         compute_dtype=jnp.float32):
    """Pad to lane-dense shapes, cast matmul operands to compute_dtype,
    K-stack skip weights, pack all biases into one (1, sum_dp) row."""
    compute_dtype = np.dtype(compute_dtype)
    fc = params["fc"]
    skips = params["skip"]

    dp_in0 = _round_up(n_input, _LANE)
    dp_hidden = [_round_up(d, _LANE) for d in n_hidden_list]
    skip_ids = [i for i in range(len(n_hidden_list)) if (i + 1) % skip == 0]
    last_skip = skip_ids[-1] if skip_ids else -1

    hist_dims = [n_input]   # real widths of stored x_history entries
    hist_pads = [dp_in0]    # padded widths of stored x_history entries

    weight_arrays = []      # flat list: w[, ws_stacked] per layer
    bias_blocks = []
    plan = []
    hist_end = dp_in0
    bias_off = 0
    dest = 1
    din, dp_din = n_input, dp_in0
    for i, (w, b) in enumerate(fc):
        dout, dp_dout = n_hidden_list[i], dp_hidden[i]
        wp = (jnp.zeros((dp_din, dp_dout), jnp.float32)
              .at[:din, :dout].set(w).astype(compute_dtype))
        bp = jnp.zeros((1, dp_dout), jnp.float32).at[0, :dout].set(b)
        weight_arrays.append(wp)
        bias_blocks.append(bp)
        is_skip = ((i + 1) % skip == 0)
        if is_skip:
            blocks = []
            for j, (hd, hp) in enumerate(zip(hist_dims, hist_pads)):
                ws = skips[f"{j}_{dest}"]   # (hd, dout), bias-free skip linear
                blocks.append(jnp.zeros((hp, dp_dout), jnp.float32)
                              .at[:hd, :dout].set(ws))
            weight_arrays.append(
                jnp.concatenate(blocks, axis=0).astype(compute_dtype))
            store_ckpt = (i != last_skip)   # last skip layer's ckpt is never read
            plan.append(_LayerPlan(True, dp_dout, hist_end,
                                   hist_end if store_ckpt else -1,
                                   store_ckpt, bias_off))
            if store_ckpt:
                hist_dims.append(dout)
                hist_pads.append(dp_dout)
                hist_end += dp_dout
            dest += 1
        else:
            plan.append(_LayerPlan(False, dp_dout, -1, -1, False, bias_off))
        bias_off += dp_dout
        din, dp_din = dout, dp_dout

    return {
        "weights": weight_arrays,
        "bias_packed": jnp.concatenate(bias_blocks, axis=1),   # (1, sum_dp)
        "plan": tuple(plan),
        "slab_k": hist_end,
        "dp_in": dp_in0,
        "dp_out": dp_hidden[-1],
        "n_input": n_input,
        "n_out": n_hidden_list[-1],
        "compute_dtype": compute_dtype,
        "store_input": bool(skip_ids),
    }


# ---------------------------------------------------------------------------
# Wrapper: one pallas_call for the whole forward pass
# ---------------------------------------------------------------------------
def _vmem_cap_bytes():
    # Physical VMEM differs per generation (v5e/v6e: 128 MiB, v7x: 64 MiB/TC).
    try:
        cap = int(pltpu.get_tpu_info().vmem_capacity_bytes)
        return max(cap - (8 << 20), 32 << 20)
    except Exception:
        return 56 << 20     # conservative fallback: safe even on v7x


def densenet_forward_fused(x, fused, acts):
    plan = fused["plan"]
    weights = fused["weights"]
    bias_packed = fused["bias_packed"]
    dp_in, dp_out = fused["dp_in"], fused["dp_out"]
    n_in, n_out = fused["n_input"], fused["n_out"]
    slab_k = fused["slab_k"]
    cdt = fused["compute_dtype"]
    assert len(acts) == len(plan)

    B = x.shape[0]
    bp8 = _round_up(max(B, 1), _SUBLANE)
    if bp8 <= _SUBLANE:
        # Tiny batch: no grid at all -> no pipeline bookkeeping (latency path).
        tb, nb, bp = bp8, 1, bp8
    else:
        # Always >= 2 grid steps so ("parallel",) shards the batch across both
        # v7x TensorCores; 256-row tiles fill the 256x256 MXU on v6e/v7x.
        tb = min(_round_up(pl.cdiv(bp8, 2), _SUBLANE), 256)
        bp = _round_up(bp8, tb)
        nb = bp // tb

    xp = jnp.zeros((bp, dp_in), jnp.float32).at[:B, :n_in].set(x)

    kernel = functools.partial(
        _fused_densenet_kernel, plan=plan, acts=tuple(acts), dp_in=dp_in,
        store_input=fused["store_input"])

    # --- footprint-derived VMEM limit, capped per chip -----------------------
    w_bytes = sum(int(a.size) * a.dtype.itemsize for a in weights)
    b_bytes = int(bias_packed.size) * bias_packed.dtype.itemsize
    io_bytes = 4 * tb * (dp_in + dp_out)
    slab_bytes = tb * slab_k * cdt.itemsize
    bufs = 2 if nb > 1 else 1      # conservative: assume 2 buffers when gridded
    footprint = bufs * (w_bytes + b_bytes + io_bytes) + slab_bytes
    vmem_limit = int(min(max(footprint + (4 << 20), 16 << 20), _vmem_cap_bytes()))

    # --- advisory cost estimate ----------------------------------------------
    flops, trans = 0, 0
    k_prev = dp_in
    for meta, act in zip(plan, acts):
        flops += 2 * bp * k_prev * meta.dp_out
        if meta.is_skip:
            flops += 2 * bp * meta.hist_end_in * meta.dp_out
        if act == "tanh":
            trans += bp * meta.dp_out
        k_prev = meta.dp_out
    cost = pl.CostEstimate(
        flops=int(flops), transcendentals=int(trans),
        bytes_accessed=int(4 * xp.size + w_bytes + b_bytes + 4 * bp * dp_out))

    out_shape = jax.ShapeDtypeStruct((bp, dp_out), jnp.float32)

    if nb == 1:
        out = pl.pallas_call(
            kernel,
            out_shape=out_shape,
            scratch_shapes=[pltpu.VMEM((bp, slab_k), cdt)],
            compiler_params=pltpu.CompilerParams(vmem_limit_bytes=vmem_limit),
            cost_estimate=cost,
        )(xp, *weights, bias_packed)
        return out[:B, :n_out]

    def call(single_buffer_consts):
        const_kw = ({"pipeline_mode": pl.Buffered(1)}
                    if single_buffer_consts else {})
        in_specs = [pl.BlockSpec((tb, dp_in), lambda bi: (bi, 0))]
        for arr in weights:        # grid-constant -> VMEM-resident, 1 buffer
            in_specs.append(pl.BlockSpec(arr.shape, lambda bi: (0, 0), **const_kw))
        in_specs.append(pl.BlockSpec(bias_packed.shape, lambda bi: (0, 0),
                                     **const_kw))
        return pl.pallas_call(
            kernel,
            out_shape=out_shape,
            grid=(nb,),
            in_specs=in_specs,
            out_specs=pl.BlockSpec((tb, dp_out), lambda bi: (bi, 0)),
            scratch_shapes=[pltpu.VMEM((tb, slab_k), cdt)],
            compiler_params=pltpu.CompilerParams(
                dimension_semantics=("parallel",),
                vmem_limit_bytes=vmem_limit),
            cost_estimate=cost,
        )(xp, *weights, bias_packed)

    try:
        out = call(True)           # single-buffered grid-constant operands
    except Exception:
        out = call(False)          # fallback if pipeline_mode=Buffered(1) rejected
    return out[:B, :n_out]


# ---------------------------------------------------------------------------
# Parameter construction (mirrors DNN_Densenet.__init__) and pure-JAX reference
# ---------------------------------------------------------------------------
def init_params(key, n_input, n_hidden_list, skip):
    dims_in = [n_input] + n_hidden_list[:-1]
    dims_out = list(n_hidden_list)
    fc = []
    for din, dout in zip(dims_in, dims_out):
        key, k1, k2 = jax.random.split(key, 3)
        w = jax.random.normal(k1, (din, dout), jnp.float32) / jnp.sqrt(din)
        b = jax.random.normal(k2, (dout,), jnp.float32) * 0.05
        fc.append((w, b))

    n_skip_hidden_list = [n_input] + [
        n_hidden_list[i] for i in range(skip - 1, len(n_hidden_list), skip)
    ]
    skip_layers = {}
    for i in range(1, len(n_skip_hidden_list)):
        for j in range(i):
            key, k = jax.random.split(key)
            din, dout = n_skip_hidden_list[j], n_skip_hidden_list[i]
            skip_layers[f"{j}_{i}"] = (
                jax.random.normal(k, (din, dout), jnp.float32) / jnp.sqrt(din)
            )
    n = len(n_skip_hidden_list) - 1
    assert len(skip_layers) == n * (n + 1) // 2
    return {"fc": fc, "skip": skip_layers}


def densenet_reference(x, params, *, skip, acts):
    """Pure-JAX mirror of DNN_Densenet.forward (for verification)."""
    fc = params["fc"]
    skips = params["skip"]
    x_history = [x]
    dest = 1
    for i, (w, b) in enumerate(fc):
        if (i + 1) % skip == 0:
            skip_x = jnp.stack(
                [x_ @ skips[f"{src}_{dest}"] for src, x_ in enumerate(x_history)],
                axis=-1,
            ).sum(axis=-1)
            x = _apply_act(x @ w + b + skip_x, acts[i])
            x_history.append(x)
            dest += 1
        else:
            x = _apply_act(x @ w + b, acts[i])
    return x


# ---------------------------------------------------------------------------
if __name__ == "__main__":
    batch = 8
    n_input = 32
    n_hidden_list = [32, 64, 32, 32]
    skip = 2
    acts = ["tanh", "tanh", "tanh", "identity"]

    key = jax.random.PRNGKey(0)
    key, kx, kp = jax.random.split(key, 3)
    x_small = jax.random.normal(kx, (batch, n_input), jnp.float32)
    params = init_params(kp, n_input, n_hidden_list, skip)
    ref_small = densenet_reference(x_small, params, skip=skip, acts=acts)

    # 1) f32 operands, tiny batch -> no-grid latency path.
    fused_f32 = prepare_fused_params(params, n_input, n_hidden_list, skip)
    out = jax.block_until_ready(densenet_forward_fused(x_small, fused_f32, acts))
    assert out.shape == (batch, n_hidden_list[-1])
    assert jnp.allclose(out, ref_small, atol=1e-4, rtol=1e-4), "f32 small-batch mismatch"

    # 2) f32 operands, larger batch -> gridded path (>=2 tiles, megacore parallel).
    key, kx2 = jax.random.split(key)
    x_big = jax.random.normal(kx2, (40, n_input), jnp.float32)
    ref_big = densenet_reference(x_big, params, skip=skip, acts=acts)
    out_big = jax.block_until_ready(densenet_forward_fused(x_big, fused_f32, acts))
    assert out_big.shape == (40, n_hidden_list[-1])
    assert jnp.allclose(out_big, ref_big, atol=1e-4, rtol=1e-4), "f32 gridded mismatch"

    # 3) bf16 MXU operands (flag), f32 accumulate -> looser tolerance.
    fused_bf16 = prepare_fused_params(params, n_input, n_hidden_list, skip,
                                      compute_dtype=jnp.bfloat16)
    out_bf = jax.block_until_ready(densenet_forward_fused(x_small, fused_bf16, acts))
    assert jnp.allclose(out_bf, ref_small, atol=0.1, rtol=0.1), "bf16 mismatch"

    print("KERNEL_OK")
</pallas_src>

<mosaic_0001>
module attributes {stable_mosaic.version = 11 : i64} {
  func.func @_fused_densenet_kernel(%arg0: memref<8x128xf32, #tpu.memory_space<vmem>>, %arg1: memref<128x128xf32, #tpu.memory_space<vmem>>, %arg2: memref<128x128xf32, #tpu.memory_space<vmem>>, %arg3: memref<128x128xf32, #tpu.memory_space<vmem>>, %arg4: memref<128x128xf32, #tpu.memory_space<vmem>>, %arg5: memref<128x128xf32, #tpu.memory_space<vmem>>, %arg6: memref<256x128xf32, #tpu.memory_space<vmem>>, %arg7: memref<1x512xf32, #tpu.memory_space<vmem>>, %arg8: memref<8x128xf32, #tpu.memory_space<vmem>>, %arg9: memref<8x256xf32, #tpu.memory_space<vmem>>) attributes {dimension_semantics = [], scalar_prefetch = 0 : i64, scratch_operands = 1 : i64, tpu.core_type = #tpu.core_type<tc>} {
    %c0 = arith.constant 0 : index
    %c0_0 = arith.constant 0 : index
    %0 = vector.load %arg0[%c0, %c0_0] : memref<8x128xf32, #tpu.memory_space<vmem>>, vector<8x128xf32>
    %c0_1 = arith.constant 0 : index
    %c0_2 = arith.constant 0 : index
    %1 = vector.load %arg9[%c0_1, %c0_2] : memref<8x256xf32, #tpu.memory_space<vmem>>, vector<8x128xf32>
    tpu.vector_store %arg9[%c0_1, %c0_2], %0 {strides = array<i32>} : memref<8x256xf32, #tpu.memory_space<vmem>>, vector<8x128xf32>,
    %c0_3 = arith.constant 0 : index
    %c0_4 = arith.constant 0 : index
    %2 = vector.load %arg1[%c0_3, %c0_4] : memref<128x128xf32, #tpu.memory_space<vmem>>, vector<128x128xf32>
    %cst = arith.constant dense<0.000000e+00> : vector<8x128xf32>
    %3 = tpu.matmul %0, %2, %cst {dimension_numbers = #tpu.dot_dimension_numbers<[1], [0], [0], [1], [0, 0, 1, 1], [], []>} : vector<8x128xf32>, vector<128x128xf32>, vector<8x128xf32> -> vector<8x128xf32>
    %c0_5 = arith.constant 0 : index
    %c0_6 = arith.constant 0 : index
    %4 = vector.load %arg7[%c0_5, %c0_6] : memref<1x512xf32, #tpu.memory_space<vmem>>, vector<1x128xf32>
    %5 = vector.broadcast %4 : vector<1x128xf32> to vector<8x128xf32>
    %6 = arith.addf %3, %5 : vector<8x128xf32>
    %7 = math.tanh %6 : vector<8x128xf32>
    %c0_7 = arith.constant 0 : index
    %c0_8 = arith.constant 0 : index
    %8 = vector.load %arg2[%c0_7, %c0_8] : memref<128x128xf32, #tpu.memory_space<vmem>>, vector<128x128xf32>
    %cst_9 = arith.constant dense<0.000000e+00> : vector<8x128xf32>
    %9 = tpu.matmul %7, %8, %cst_9 {dimension_numbers = #tpu.dot_dimension_numbers<[1], [0], [0], [1], [0, 0, 1, 1], [], []>} : vector<8x128xf32>, vector<128x128xf32>, vector<8x128xf32> -> vector<8x128xf32>
    %c0_10 = arith.constant 0 : index
    %c0_11 = arith.constant 0 : index
    %10 = vector.load %arg3[%c0_10, %c0_11] : memref<128x128xf32, #tpu.memory_space<vmem>>, vector<128x128xf32>
    %c0_12 = arith.constant 0 : index
    %c0_13 = arith.constant 0 : index
    %11 = vector.load %arg9[%c0_12, %c0_13] : memref<8x256xf32, #tpu.memory_space<vmem>>, vector<8x128xf32>
    %cst_14 = arith.constant dense<0.000000e+00> : vector<8x128xf32>
    %12 = tpu.matmul %11, %10, %cst_14 {dimension_numbers = #tpu.dot_dimension_numbers<[1], [0], [0], [1], [0, 0, 1, 1], [], []>} : vector<8x128xf32>, vector<128x128xf32>, vector<8x128xf32> -> vector<8x128xf32>
    %13 = arith.addf %9, %12 : vector<8x128xf32>
    %c0_15 = arith.constant 0 : index
    %c128 = arith.constant 128 : index
    %14 = vector.load %arg7[%c0_15, %c128] : memref<1x512xf32, #tpu.memory_space<vmem>>, vector<1x128xf32>
    %15 = vector.broadcast %14 : vector<1x128xf32> to vector<8x128xf32>
    %16 = arith.addf %13, %15 : vector<8x128xf32>
    %17 = math.tanh %16 : vector<8x128xf32>
    %c0_16 = arith.constant 0 : index
    %c128_17 = arith.constant 128 : index
    %18 = vector.load %arg9[%c0_16, %c128_17] : memref<8x256xf32, #tpu.memory_space<vmem>>, vector<8x128xf32>
    tpu.vector_store %arg9[%c0_16, %c128_17], %17 {strides = array<i32>} : memref<8x256xf32, #tpu.memory_space<vmem>>, vector<8x128xf32>,
    %c0_18 = arith.constant 0 : index
    %c0_19 = arith.constant 0 : index
    %19 = vector.load %arg4[%c0_18, %c0_19] : memref<128x128xf32, #tpu.memory_space<vmem>>, vector<128x128xf32>
    %cst_20 = arith.constant dense<0.000000e+00> : vector<8x128xf32>
    %20 = tpu.matmul %17, %19, %cst_20 {dimension_numbers = #tpu.dot_dimension_numbers<[1], [0], [0], [1], [0, 0, 1, 1], [], []>} : vector<8x128xf32>, vector<128x128xf32>, vector<8x128xf32> -> vector<8x128xf32>
    %c0_21 = arith.constant 0 : index
    %c256 = arith.constant 256 : index
    %21 = vector.load %arg7[%c0_21, %c256] : memref<1x512xf32, #tpu.memory_space<vmem>>, vector<1x128xf32>
    %22 = vector.broadcast %21 : vector<1x128xf32> to vector<8x128xf32>
    %23 = arith.addf %20, %22 : vector<8x128xf32>
    %24 = math.tanh %23 : vector<8x128xf32>
    %c0_22 = arith.constant 0 : index
    %c0_23 = arith.constant 0 : index
    %25 = vector.load %arg5[%c0_22, %c0_23] : memref<128x128xf32, #tpu.memory_space<vmem>>, vector<128x128xf32>
    %cst_24 = arith.constant dense<0.000000e+00> : vector<8x128xf32>
    %26 = tpu.matmul %24, %25, %cst_24 {dimension_numbers = #tpu.dot_dimension_numbers<[1], [0], [0], [1], [0, 0, 1, 1], [], []>} : vector<8x128xf32>, vector<128x128xf32>, vector<8x128xf32> -> vector<8x128xf32>
    %c0_25 = arith.constant 0 : index
    %c0_26 = arith.constant 0 : index
    %27 = vector.load %arg6[%c0_25, %c0_26] : memref<256x128xf32, #tpu.memory_space<vmem>>, vector<256x128xf32>
    %c0_27 = arith.constant 0 : index
    %c0_28 = arith.constant 0 : index
    %28 = vector.load %arg9[%c0_27, %c0_28] : memref<8x256xf32, #tpu.memory_space<vmem>>, vector<8x256xf32>
    %cst_29 = arith.constant dense<0.000000e+00> : vector<8x128xf32>
    %29 = tpu.matmul %28, %27, %cst_29 {dimension_numbers = #tpu.dot_dimension_numbers<[1], [0], [0], [1], [0, 0, 1, 1], [], []>} : vector<8x256xf32>, vector<256x128xf32>, vector<8x128xf32> -> vector<8x128xf32>
    %30 = arith.addf %26, %29 : vector<8x128xf32>
    %c0_30 = arith.constant 0 : index
    %c384 = arith.constant 384 : index
    %31 = vector.load %arg7[%c0_30, %c384] : memref<1x512xf32, #tpu.memory_space<vmem>>, vector<1x128xf32>
    %32 = vector.broadcast %31 : vector<1x128xf32> to vector<8x128xf32>
    %33 = arith.addf %30, %32 : vector<8x128xf32>
    %c0_31 = arith.constant 0 : index
    %c0_32 = arith.constant 0 : index
    %34 = vector.load %arg8[%c0_31, %c0_32] : memref<8x128xf32, #tpu.memory_space<vmem>>, vector<8x128xf32>
    tpu.vector_store %arg8[%c0_31, %c0_32], %33 {strides = array<i32>} : memref<8x128xf32, #tpu.memory_space<vmem>>, vector<8x128xf32>,
    return
  }
}

</mosaic_0001>

<llo_original>
// kernel: tpu_custom_call.1
$region0: #{tpu_custom_call.1}
  #allocation0 [shape = 'u32[]', space=smem, size = 0x4, offset = 0x4, fixed_abs, tag = 'smem constant byte address 0x4 - core index']
  #allocation1 [shape = 'u32[144,128]{1,0:T(1,128)}', space=vmem, size = 0x12000, scoped, tag = 'internal scratch']
  #allocation2 [shape = 'f32[8,256]{1,0:T(8,128)}', space=vmem, size = 0x2000, scoped, tag = 'scratch operand']
  %s0 = inlined_call_operand.hbm [shape: f32[8,128], index: 0, kind: input, shape index: {}]
  %s1 = inlined_call_operand.hbm [shape: f32[128,128], index: 1, kind: input, shape index: {}]
  %s2 = inlined_call_operand.hbm [shape: f32[128,128], index: 2, kind: input, shape index: {}]
  %s3 = inlined_call_operand.hbm [shape: f32[128,128], index: 3, kind: input, shape index: {}]
  %s4 = inlined_call_operand.hbm [shape: f32[128,128], index: 4, kind: input, shape index: {}]
  %s5 = inlined_call_operand.hbm [shape: f32[128,128], index: 5, kind: input, shape index: {}]
  %s6 = inlined_call_operand.hbm [shape: f32[256,128], index: 6, kind: input, shape index: {}]
  %s7 = inlined_call_operand.vmem [shape: f32[1,512], index: 7, kind: input, shape index: {}]
  %s8 = inlined_call_operand.hbm [shape: f32[8,128], index: 8, kind: output, shape index: {}]
  %s9 = sld [smem:[#allocation0]]
  $region70: #{tpu_custom_call.1} parent=0
    _
  %s11 = ssub.s32 1, %s9
  %s12 = scalar_select 0, %s11, %s9
  $region1: #{tpu_custom_call.1} parent=0
    #allocation3 [shape = 'u8[4096]{0}', space=vmem, size = 0x1000, scoped, tag = 'input window, operand 0, single buffered']
    #allocation4 [shape = 's32[1]{0}', space=sflag, size = 0x4, scoped, tag = 'scoped memory for tpu_custom_call.1']
    #allocation5 [shape = 's32[1]{0}', space=sflag, size = 0x4, scoped, tag = 'scoped memory for tpu_custom_call.1']
    #allocation6 [shape = 'u8[65536]{0}', space=vmem, size = 0x10000, scoped, tag = 'input window, operand 1, single buffered']
    #allocation7 [shape = 's32[1]{0}', space=sflag, size = 0x4, scoped, tag = 'scoped memory for tpu_custom_call.1']
    #allocation8 [shape = 'u8[65536]{0}', space=vmem, size = 0x10000, scoped, tag = 'input window, operand 2, single buffered']
    #allocation9 [shape = 'u8[65536]{0}', space=vmem, size = 0x10000, scoped, tag = 'input window, operand 3, single buffered']
    #allocation10 [shape = 's32[1]{0}', space=sflag, size = 0x4, scoped, tag = 'scoped memory for tpu_custom_call.1']
    #allocation11 [shape = 'u8[65536]{0}', space=vmem, size = 0x10000, scoped, tag = 'input window, operand 4, single buffered']
    #allocation12 [shape = 'u8[65536]{0}', space=vmem, size = 0x10000, scoped, tag = 'input window, operand 5, single buffered']
    #allocation13 [shape = 's32[1]{0}', space=sflag, size = 0x4, scoped, tag = 'scoped memory for tpu_custom_call.1']
    #allocation14 [shape = 'u8[131072]{0}', space=vmem, size = 0x20000, scoped, tag = 'input window, operand 6, single buffered']
    #allocation15 [shape = 'u8[4096]{0}', space=vmem, size = 0x1000, scoped, tag = 'output window, operand 0, single buffered']
    %13 = vsyncpa [#allocation4], 0
    %14 = vsyncpa [#allocation7], 0
    %15 = vsyncpa [#allocation10], 0
    %16 = vsyncpa [#allocation13], 0
    %17 = vsyncpa [#allocation5], 0
    // Predicated region
    $region2: #{tpu_custom_call.1} parent=1 // pred_check
      _
    $region3: #{tpu_custom_call.1} parent=1 // pred_check_branch
      %19 = sbr.rel (0) target = $region5
    $region4: #{tpu_custom_call.1} parent=1 // pred_region
      %s21 = ssub.s32 128, 128
      %22 = vsyncadd [#allocation4], %s21
      %s24 = sshll.u32 [#allocation3], 4
      %s25 = int_to_ptr.vmem [resolvable:$true] %s24
      %27 = dma.hbm_to_vmem [thread:$0]  %s0, 128, %s25, [#allocation4]
    $region5: #{tpu_custom_call.1} parent=1 // pred_fallthru
      _
    // Predicated region
    $region6: #{tpu_custom_call.1} parent=1 // pred_check
      _
    $region7: #{tpu_custom_call.1} parent=1 // pred_check_branch
      %29 = sbr.rel (0) target = $region9
    $region8: #{tpu_custom_call.1} parent=1 // pred_region
      %s31 = ssub.s32 2048, 2048
      %32 = vsyncadd [#allocation7], %s31
      %s33 = sshll.u32 [#allocation6], 4
      %s34 = int_to_ptr.vmem [resolvable:$true] %s33
      %39 = dma.hbm_to_vmem [thread:$0]  %s1, 2048, %s34, [#allocation7], 128, 128, 8
    $region9: #{tpu_custom_call.1} parent=1 // pred_fallthru
      _
    // Predicated region
    $region10: #{tpu_custom_call.1} parent=1 // pred_check
      _
    $region11: #{tpu_custom_call.1} parent=1 // pred_check_branch
      %41 = sbr.rel (0) target = $region13
    $region12: #{tpu_custom_call.1} parent=1 // pred_region
      %s43 = ssub.s32 2048, 2048
      %44 = vsyncadd [#allocation7], %s43
      %s45 = sshll.u32 [#allocation8], 4
      %s46 = int_to_ptr.vmem [resolvable:$true] %s45
      %51 = dma.hbm_to_vmem [thread:$0]  %s2, 2048, %s46, [#allocation7], 128, 128, 8
    $region13: #{tpu_custom_call.1} parent=1 // pred_fallthru
      _
    // Predicated region
    $region14: #{tpu_custom_call.1} parent=1 // pred_check
      _
    $region15: #{tpu_custom_call.1} parent=1 // pred_check_branch
      %53 = sbr.rel (0) target = $region17
    $region16: #{tpu_custom_call.1} parent=1 // pred_region
      %s55 = ssub.s32 2048, 2048
      %56 = vsyncadd [#allocation10], %s55
      %s57 = sshll.u32 [#allocation9], 4
      %s58 = int_to_ptr.vmem [resolvable:$true] %s57
      %63 = dma.hbm_to_vmem [thread:$0]  %s3, 2048, %s58, [#allocation10], 128, 128, 8
    $region17: #{tpu_custom_call.1} parent=1 // pred_fallthru
      _
    // Predicated region
    $region18: #{tpu_custom_call.1} parent=1 // pred_check
      _
    $region19: #{tpu_custom_call.1} parent=1 // pred_check_branch
      %65 = sbr.rel (0) target = $region21
    $region20: #{tpu_custom_call.1} parent=1 // pred_region
      %s67 = ssub.s32 2048, 2048
      %68 = vsyncadd [#allocation10], %s67
      %s69 = sshll.u32 [#allocation11], 4
      %s70 = int_to_ptr.vmem [resolvable:$true] %s69
      %75 = dma.hbm_to_vmem [thread:$0]  %s4, 2048, %s70, [#allocation10], 128, 128, 8
    $region21: #{tpu_custom_call.1} parent=1 // pred_fallthru
      _
    // Predicated region
    $region22: #{tpu_custom_call.1} parent=1 // pred_check
      _
    $region23: #{tpu_custom_call.1} parent=1 // pred_check_branch
      %77 = sbr.rel (0) target = $region25
    $region24: #{tpu_custom_call.1} parent=1 // pred_region
      %s79 = ssub.s32 2048, 2048
      %80 = vsyncadd [#allocation13], %s79
      %s81 = sshll.u32 [#allocation12], 4
      %s82 = int_to_ptr.vmem [resolvable:$true] %s81
      %87 = dma.hbm_to_vmem [thread:$0]  %s5, 2048, %s82, [#allocation13], 128, 128, 8
    $region25: #{tpu_custom_call.1} parent=1 // pred_fallthru
      _
    // Predicated region
    $region26: #{tpu_custom_call.1} parent=1 // pred_check
      _
    $region27: #{tpu_custom_call.1} parent=1 // pred_check_branch
      %89 = sbr.rel (0) target = $region29
    $region28: #{tpu_custom_call.1} parent=1 // pred_region
      %s91 = ssub.s32 4096, 4096
      %92 = vsyncadd [#allocation13], %s91
      %s93 = sshll.u32 [#allocation14], 4
      %s94 = int_to_ptr.vmem [resolvable:$true] %s93
      %99 = dma.hbm_to_vmem [thread:$0]  %s6, 4096, %s94, [#allocation13], 128, 128, 8
    $region29: #{tpu_custom_call.1} parent=1 // pred_fallthru
      _
    // Predicated region
    $region30: #{tpu_custom_call.1} parent=1 // pred_check
      _
    $region31: #{tpu_custom_call.1} parent=1 // pred_check_branch
      %101 = sbr.rel (0) target = $region33
    $region32: #{tpu_custom_call.1} parent=1 // pred_region
      _
    $region33: #{tpu_custom_call.1} parent=1 // pred_fallthru
      _
    // Predicated region
    $region34: #{tpu_custom_call.1} parent=1 // pred_check
      _
    $region35: #{tpu_custom_call.1} parent=1 // pred_check_branch
      %103 = sbr.rel (0) target = $region37
    $region36: #{tpu_custom_call.1} parent=1 // pred_region
      %104 = dma.done [#allocation4], 128
    $region37: #{tpu_custom_call.1} parent=1 // pred_fallthru
      _
    // Predicated region
    $region38: #{tpu_custom_call.1} parent=1 // pred_check
      _
    $region39: #{tpu_custom_call.1} parent=1 // pred_check_branch
      %106 = sbr.rel (0) target = $region41
    $region40: #{tpu_custom_call.1} parent=1 // pred_region
      %107 = dma.done [#allocation7], 2048
    $region41: #{tpu_custom_call.1} parent=1 // pred_fallthru
      _
    // Predicated region
    $region42: #{tpu_custom_call.1} parent=1 // pred_check
      _
    $region43: #{tpu_custom_call.1} parent=1 // pred_check_branch
      %109 = sbr.rel (0) target = $region45
    $region44: #{tpu_custom_call.1} parent=1 // pred_region
      %110 = dma.done [#allocation7], 2048
    $region45: #{tpu_custom_call.1} parent=1 // pred_fallthru
      _
    // Predicated region
    $region46: #{tpu_custom_call.1} parent=1 // pred_check
      _
    $region47: #{tpu_custom_call.1} parent=1 // pred_check_branch
      %112 = sbr.rel (0) target = $region49
    $region48: #{tpu_custom_call.1} parent=1 // pred_region
      %113 = dma.done [#allocation10], 2048
    $region49: #{tpu_custom_call.1} parent=1 // pred_fallthru
      _
    // Predicated region
    $region50: #{tpu_custom_call.1} parent=1 // pred_check
      _
    $region51: #{tpu_custom_call.1} parent=1 // pred_check_branch
      %115 = sbr.rel (0) target = $region53
    $region52: #{tpu_custom_call.1} parent=1 // pred_region
      %116 = dma.done [#allocation10], 2048
    $region53: #{tpu_custom_call.1} parent=1 // pred_fallthru
      _
    // Predicated region
    $region54: #{tpu_custom_call.1} parent=1 // pred_check
      _
    $region55: #{tpu_custom_call.1} parent=1 // pred_check_branch
      %118 = sbr.rel (0) target = $region57
    $region56: #{tpu_custom_call.1} parent=1 // pred_region
      %119 = dma.done [#allocation13], 2048
    $region57: #{tpu_custom_call.1} parent=1 // pred_fallthru
      _
    // Predicated region
    $region58: #{tpu_custom_call.1} parent=1 // pred_check
      _
    $region59: #{tpu_custom_call.1} parent=1 // pred_check_branch
      %121 = sbr.rel (0) target = $region61
    $region60: #{tpu_custom_call.1} parent=1 // pred_region
      %122 = dma.done [#allocation13], 4096
    $region61: #{tpu_custom_call.1} parent=1 // pred_fallthru
      _
    %v123 = vld [vmem:[#allocation3] sm:$0xff]
    %124 = vst [vmem:[#allocation2] sm:$0xff] %v123
    %v125 = vld [vmem:[#allocation6] sm:$0xff]
    %v126 = vld [vmem:[#allocation6 + $0x8] sm:$0xff]
    %v127 = vld [vmem:[#allocation6 + $0x10] sm:$0xff]
    %v128 = vld [vmem:[#allocation6 + $0x18] sm:$0xff]
    %v129 = vld [vmem:[#allocation6 + $0x20] sm:$0xff]
    %v130 = vld [vmem:[#allocation6 + $0x28] sm:$0xff]
    %v131 = vld [vmem:[#allocation6 + $0x30] sm:$0xff]
    %v132 = vld [vmem:[#allocation6 + $0x38] sm:$0xff]
    %v133 = vld [vmem:[#allocation6 + $0x40] sm:$0xff]
    %v134 = vld [vmem:[#allocation6 + $0x48] sm:$0xff]
    %v135 = vld [vmem:[#allocation6 + $0x50] sm:$0xff]
    %v136 = vld [vmem:[#allocation6 + $0x58] sm:$0xff]
    %v137 = vld [vmem:[#allocation6 + $0x60] sm:$0xff]
    %v138 = vld [vmem:[#allocation6 + $0x68] sm:$0xff]
    %v139 = vld [vmem:[#allocation6 + $0x70] sm:$0xff]
    %v140 = vld [vmem:[#allocation6 + $0x78] sm:$0xff]
    %v141 = vld [vmem:[%s7] sm:$0x1]
    %v143 = vlaneseq
    %v144 = vshrl.u32 %v143, 7
    %v145 = vsub.s32 0, %v144
    %v146 = vrot.slane %v141, %v145
    %148 = vmatprep.subr.mxu0 0.0
    %149 = vmatpush1.msra.mxu0 %v125
    %150 = vmatprep.subr.mxu0 0.0
    %151 = vmatpush1.msra.mxu0 %v126
    %152 = vmatprep.subr.mxu0 0.0
    %153 = vmatpush1.msra.mxu0 %v127
    %154 = vmatprep.subr.mxu0 0.0
    %155 = vmatpush1.msra.mxu0 %v128
    %156 = vmatprep.subr.mxu0 0.0
    %157 = vmatpush1.msra.mxu0 %v129
    %158 = vmatprep.subr.mxu0 0.0
    %159 = vmatpush1.msra.mxu0 %v130
    %160 = vmatprep.subr.mxu0 0.0
    %161 = vmatpush1.msra.mxu0 %v131
    %162 = vmatprep.subr.mxu0 0.0
    %163 = vmatpush1.msra.mxu0 %v132
    %164 = vmatprep.subr.mxu0 0.0
    %165 = vmatpush1.msra.mxu0 %v133
    %166 = vmatprep.subr.mxu0 0.0
    %167 = vmatpush1.msra.mxu0 %v134
    %168 = vmatprep.subr.mxu0 0.0
    %169 = vmatpush1.msra.mxu0 %v135
    %170 = vmatprep.subr.mxu0 0.0
    %171 = vmatpush1.msra.mxu0 %v136
    %172 = vmatprep.subr.mxu0 0.0
    %173 = vmatpush1.msra.mxu0 %v137
    %174 = vmatprep.subr.mxu0 0.0
    %175 = vmatpush1.msra.mxu0 %v138
    %176 = vmatprep.subr.mxu0 0.0
    %177 = vmatpush1.msra.mxu0 %v139
    %178 = vmatprep.subr.mxu0 0.0
    %179 = vmatpush1.msra.mxu0 %v140
    %180 = vmatprep.subr.mxu0 0.0
    %181 = vmatpush1.msra.mxu0 0.0
    %182 = vmatprep.subr.mxu0 0.0
    %183 = vmatpush1.msra.mxu0 0.0
    %184 = vmatprep.subr.mxu0 0.0
    %185 = vmatpush1.msra.mxu0 0.0
    %186 = vmatprep.subr.mxu0 0.0
    %187 = vmatpush1.msra.mxu0 0.0
    %188 = vmatprep.subr.mxu0 0.0
    %189 = vmatpush1.msra.mxu0 0.0
    %190 = vmatprep.subr.mxu0 0.0
    %191 = vmatpush1.msra.mxu0 0.0
    %192 = vmatprep.subr.mxu0 0.0
    %193 = vmatpush1.msra.mxu0 0.0
    %194 = vmatprep.subr.mxu0 0.0
    %195 = vmatpush1.msra.mxu0 0.0
    %196 = vmatprep.subr.mxu0 0.0
    %197 = vmatpush1.msra.mxu0 0.0
    %198 = vmatprep.subr.mxu0 0.0
    %199 = vmatpush1.msra.mxu0 0.0
    %200 = vmatprep.subr.mxu0 0.0
    %201 = vmatpush1.msra.mxu0 0.0
    %202 = vmatprep.subr.mxu0 0.0
    %203 = vmatpush1.msra.mxu0 0.0
    %204 = vmatprep.subr.mxu0 0.0
    %205 = vmatpush1.msra.mxu0 0.0
    %206 = vmatprep.subr.mxu0 0.0
    %207 = vmatpush1.msra.mxu0 0.0
    %208 = vmatprep.subr.mxu0 0.0
    %209 = vmatpush1.msra.mxu0 0.0
    %210 = vmatprep.subr.mxu0 0.0
    %211 = vmatpush1.msra.mxu0 0.0
    %212 = vmatprep.mubr.f32.mxu0 0.0
    %213 = vmatmul.mubr.f32.gmra.mrb[0].mxu0 %v123
    %v214 = vpop.f32.mrb[0].mxu0
    %v215 = vadd.f32 %v146, %v214
    %v216 = vpop.f32.mrb[0].mxu0
    %217 = vdwg.mxu0
    %v218 = vtanh.pop %v215
    %v219 = vld [vmem:[#allocation8] sm:$0xff]
    %v220 = vld [vmem:[#allocation8 + $0x8] sm:$0xff]
    %v221 = vld [vmem:[#allocation8 + $0x10] sm:$0xff]
    %v222 = vld [vmem:[#allocation8 + $0x18] sm:$0xff]
    %v223 = vld [vmem:[#allocation8 + $0x20] sm:$0xff]
    %v224 = vld [vmem:[#allocation8 + $0x28] sm:$0xff]
    %v225 = vld [vmem:[#allocation8 + $0x30] sm:$0xff]
    %v226 = vld [vmem:[#allocation8 + $0x38] sm:$0xff]
    %v227 = vld [vmem:[#allocation8 + $0x40] sm:$0xff]
    %v228 = vld [vmem:[#allocation8 + $0x48] sm:$0xff]
    %v229 = vld [vmem:[#allocation8 + $0x50] sm:$0xff]
    %v230 = vld [vmem:[#allocation8 + $0x58] sm:$0xff]
    %v231 = vld [vmem:[#allocation8 + $0x60] sm:$0xff]
    %v232 = vld [vmem:[#allocation8 + $0x68] sm:$0xff]
    %v233 = vld [vmem:[#allocation8 + $0x70] sm:$0xff]
    %v234 = vld [vmem:[#allocation8 + $0x78] sm:$0xff]
    %v235 = vld [vmem:[#allocation9] sm:$0xff]
    %v236 = vld [vmem:[#allocation9 + $0x8] sm:$0xff]
    %v237 = vld [vmem:[#allocation9 + $0x10] sm:$0xff]
    %v238 = vld [vmem:[#allocation9 + $0x18] sm:$0xff]
    %v239 = vld [vmem:[#allocation9 + $0x20] sm:$0xff]
    %v240 = vld [vmem:[#allocation9 + $0x28] sm:$0xff]
    %v241 = vld [vmem:[#allocation9 + $0x30] sm:$0xff]
    %v242 = vld [vmem:[#allocation9 + $0x38] sm:$0xff]
    %v243 = vld [vmem:[#allocation9 + $0x40] sm:$0xff]
    %v244 = vld [vmem:[#allocation9 + $0x48] sm:$0xff]
    %v245 = vld [vmem:[#allocation9 + $0x50] sm:$0xff]
    %v246 = vld [vmem:[#allocation9 + $0x58] sm:$0xff]
    %v247 = vld [vmem:[#allocation9 + $0x60] sm:$0xff]
    %v248 = vld [vmem:[#allocation9 + $0x68] sm:$0xff]
    %v249 = vld [vmem:[#allocation9 + $0x70] sm:$0xff]
    %v250 = vld [vmem:[#allocation9 + $0x78] sm:$0xff]
    %v251 = vld [vmem:[#allocation2] sm:$0xff]
    %252 = vmatprep.subr.mxu0 0.0
    %253 = vmatpush1.msra.mxu0 %v235
    %254 = vmatprep.subr.mxu0 0.0
    %255 = vmatpush1.msra.mxu0 %v236
    %256 = vmatprep.subr.mxu0 0.0
    %257 = vmatpush1.msra.mxu0 %v237
    %258 = vmatprep.subr.mxu0 0.0
    %259 = vmatpush1.msra.mxu0 %v238
    %260 = vmatprep.subr.mxu0 0.0
    %261 = vmatpush1.msra.mxu0 %v239
    %262 = vmatprep.subr.mxu0 0.0
    %263 = vmatpush1.msra.mxu0 %v240
    %264 = vmatprep.subr.mxu0 0.0
    %265 = vmatpush1.msra.mxu0 %v241
    %266 = vmatprep.subr.mxu0 0.0
    %267 = vmatpush1.msra.mxu0 %v242
    %268 = vmatprep.subr.mxu0 0.0
    %269 = vmatpush1.msra.mxu0 %v243
    %270 = vmatprep.subr.mxu0 0.0
    %271 = vmatpush1.msra.mxu0 %v244
    %272 = vmatprep.subr.mxu0 0.0
    %273 = vmatpush1.msra.mxu0 %v245
    %274 = vmatprep.subr.mxu0 0.0
    %275 = vmatpush1.msra.mxu0 %v246
    %276 = vmatprep.subr.mxu0 0.0
    %277 = vmatpush1.msra.mxu0 %v247
    %278 = vmatprep.subr.mxu0 0.0
    %279 = vmatpush1.msra.mxu0 %v248
    %280 = vmatprep.subr.mxu0 0.0
    %281 = vmatpush1.msra.mxu0 %v249
    %282 = vmatprep.subr.mxu0 0.0
    %283 = vmatpush1.msra.mxu0 %v250
    %284 = vmatprep.subr.mxu0 0.0
    %285 = vmatpush1.msra.mxu0 0.0
    %286 = vmatprep.subr.mxu0 0.0
    %287 = vmatpush1.msra.mxu0 0.0
    %288 = vmatprep.subr.mxu0 0.0
    %289 = vmatpush1.msra.mxu0 0.0
    %290 = vmatprep.subr.mxu0 0.0
    %291 = vmatpush1.msra.mxu0 0.0
    %292 = vmatprep.subr.mxu0 0.0
    %293 = vmatpush1.msra.mxu0 0.0
    %294 = vmatprep.subr.mxu0 0.0
    %295 = vmatpush1.msra.mxu0 0.0
    %296 = vmatprep.subr.mxu0 0.0
    %297 = vmatpush1.msra.mxu0 0.0
    %298 = vmatprep.subr.mxu0 0.0
    %299 = vmatpush1.msra.mxu0 0.0
    %300 = vmatprep.subr.mxu0 0.0
    %301 = vmatpush1.msra.mxu0 0.0
    %302 = vmatprep.subr.mxu0 0.0
    %303 = vmatpush1.msra.mxu0 0.0
    %304 = vmatprep.subr.mxu0 0.0
    %305 = vmatpush1.msra.mxu0 0.0
    %306 = vmatprep.subr.mxu0 0.0
    %307 = vmatpush1.msra.mxu0 0.0
    %308 = vmatprep.subr.mxu0 0.0
    %309 = vmatpush1.msra.mxu0 0.0
    %310 = vmatprep.subr.mxu0 0.0
    %311 = vmatpush1.msra.mxu0 0.0
    %312 = vmatprep.subr.mxu0 0.0
    %313 = vmatpush1.msra.mxu0 0.0
    %314 = vmatprep.subr.mxu0 0.0
    %315 = vmatpush1.msra.mxu0 0.0
    %316 = vmatprep.mubr.f32.mxu0 0.0
    %317 = vmatmul.mubr.f32.gmra.mrb[0].mxu0 %v251
    %v318 = vpop.f32.mrb[0].mxu0
    %v319 = vadd.f32 0.0, %v318
    %v320 = vpop.f32.mrb[0].mxu0
    %321 = vdwg.mxu0
    %322 = vmatprep.subr.mxu0 0.0
    %323 = vmatpush1.msra.mxu0 %v219
    %324 = vmatprep.subr.mxu0 0.0
    %325 = vmatpush1.msra.mxu0 %v220
    %326 = vmatprep.subr.mxu0 0.0
    %327 = vmatpush1.msra.mxu0 %v221
    %328 = vmatprep.subr.mxu0 0.0
    %329 = vmatpush1.msra.mxu0 %v222
    %330 = vmatprep.subr.mxu0 0.0
    %331 = vmatpush1.msra.mxu0 %v223
    %332 = vmatprep.subr.mxu0 0.0
    %333 = vmatpush1.msra.mxu0 %v224
    %334 = vmatprep.subr.mxu0 0.0
    %335 = vmatpush1.msra.mxu0 %v225
    %336 = vmatprep.subr.mxu0 0.0
    %337 = vmatpush1.msra.mxu0 %v226
    %338 = vmatprep.subr.mxu0 0.0
    %339 = vmatpush1.msra.mxu0 %v227
    %340 = vmatprep.subr.mxu0 0.0
    %341 = vmatpush1.msra.mxu0 %v228
    %342 = vmatprep.subr.mxu0 0.0
    %343 = vmatpush1.msra.mxu0 %v229
    %344 = vmatprep.subr.mxu0 0.0
    %345 = vmatpush1.msra.mxu0 %v230
    %346 = vmatprep.subr.mxu0 0.0
    %347 = vmatpush1.msra.mxu0 %v231
    %348 = vmatprep.subr.mxu0 0.0
    %349 = vmatpush1.msra.mxu0 %v232
    %350 = vmatprep.subr.mxu0 0.0
    %351 = vmatpush1.msra.mxu0 %v233
    %352 = vmatprep.subr.mxu0 0.0
    %353 = vmatpush1.msra.mxu0 %v234
    %354 = vmatprep.subr.mxu0 0.0
    %355 = vmatpush1.msra.mxu0 0.0
    %356 = vmatprep.subr.mxu0 0.0
    %357 = vmatpush1.msra.mxu0 0.0
    %358 = vmatprep.subr.mxu0 0.0
    %359 = vmatpush1.msra.mxu0 0.0
    %360 = vmatprep.subr.mxu0 0.0
    %361 = vmatpush1.msra.mxu0 0.0
    %362 = vmatprep.subr.mxu0 0.0
    %363 = vmatpush1.msra.mxu0 0.0
    %364 = vmatprep.subr.mxu0 0.0
    %365 = vmatpush1.msra.mxu0 0.0
    %366 = vmatprep.subr.mxu0 0.0
    %367 = vmatpush1.msra.mxu0 0.0
    %368 = vmatprep.subr.mxu0 0.0
    %369 = vmatpush1.msra.mxu0 0.0
    %370 = vmatprep.subr.mxu0 0.0
    %371 = vmatpush1.msra.mxu0 0.0
    %372 = vmatprep.subr.mxu0 0.0
    %373 = vmatpush1.msra.mxu0 0.0
    %374 = vmatprep.subr.mxu0 0.0
    %375 = vmatpush1.msra.mxu0 0.0
    %376 = vmatprep.subr.mxu0 0.0
    %377 = vmatpush1.msra.mxu0 0.0
    %378 = vmatprep.subr.mxu0 0.0
    %379 = vmatpush1.msra.mxu0 0.0
    %380 = vmatprep.subr.mxu0 0.0
    %381 = vmatpush1.msra.mxu0 0.0
    %382 = vmatprep.subr.mxu0 0.0
    %383 = vmatpush1.msra.mxu0 0.0
    %384 = vmatprep.subr.mxu0 0.0
    %385 = vmatpush1.msra.mxu0 0.0
    %386 = vmatprep.mubr.f32.mxu0 0.0
    %387 = vmatmul.mubr.f32.gmra.mrb[0].mxu0 %v218
    %v388 = vpop.f32.mrb[0].mxu0
    %v389 = vadd.f32 %v319, %v388
    %v390 = vpop.f32.mrb[0].mxu0
    %391 = vdwg.mxu0
    %v392 = vld [vmem:[%s7 + $0x1] sm:$0x1]
    %v394 = vlaneseq
    %v395 = vshrl.u32 %v394, 7
    %v396 = vsub.s32 0, %v395
    %v397 = vrot.slane %v392, %v396
    %v399 = vadd.f32 %v389, %v397
    %v400 = vtanh.pop %v399
    %401 = vst [vmem:[#allocation2 + $0x8] sm:$0xff] %v400
    %v402 = vld [vmem:[#allocation11] sm:$0xff]
    %v403 = vld [vmem:[#allocation11 + $0x8] sm:$0xff]
    %v404 = vld [vmem:[#allocation11 + $0x10] sm:$0xff]
    %v405 = vld [vmem:[#allocation11 + $0x18] sm:$0xff]
    %v406 = vld [vmem:[#allocation11 + $0x20] sm:$0xff]
    %v407 = vld [vmem:[#allocation11 + $0x28] sm:$0xff]
    %v408 = vld [vmem:[#allocation11 + $0x30] sm:$0xff]
    %v409 = vld [vmem:[#allocation11 + $0x38] sm:$0xff]
    %v410 = vld [vmem:[#allocation11 + $0x40] sm:$0xff]
    %v411 = vld [vmem:[#allocation11 + $0x48] sm:$0xff]
    %v412 = vld [vmem:[#allocation11 + $0x50] sm:$0xff]
    %v413 = vld [vmem:[#allocation11 + $0x58] sm:$0xff]
    %v414 = vld [vmem:[#allocation11 + $0x60] sm:$0xff]
    %v415 = vld [vmem:[#allocation11 + $0x68] sm:$0xff]
    %v416 = vld [vmem:[#allocation11 + $0x70] sm:$0xff]
    %v417 = vld [vmem:[#allocation11 + $0x78] sm:$0xff]
    %v418 = vld [vmem:[%s7 + $0x2] sm:$0x1]
    %v420 = vlaneseq
    %v421 = vshrl.u32 %v420, 7
    %v422 = vsub.s32 0, %v421
    %v423 = vrot.slane %v418, %v422
    %425 = vmatprep.subr.mxu0 0.0
    %426 = vmatpush1.msra.mxu0 %v402
    %427 = vmatprep.subr.mxu0 0.0
    %428 = vmatpush1.msra.mxu0 %v403
    %429 = vmatprep.subr.mxu0 0.0
    %430 = vmatpush1.msra.mxu0 %v404
    %431 = vmatprep.subr.mxu0 0.0
    %432 = vmatpush1.msra.mxu0 %v405
    %433 = vmatprep.subr.mxu0 0.0
    %434 = vmatpush1.msra.mxu0 %v406
    %435 = vmatprep.subr.mxu0 0.0
    %436 = vmatpush1.msra.mxu0 %v407
    %437 = vmatprep.subr.mxu0 0.0
    %438 = vmatpush1.msra.mxu0 %v408
    %439 = vmatprep.subr.mxu0 0.0
    %440 = vmatpush1.msra.mxu0 %v409
    %441 = vmatprep.subr.mxu0 0.0
    %442 = vmatpush1.msra.mxu0 %v410
    %443 = vmatprep.subr.mxu0 0.0
    %444 = vmatpush1.msra.mxu0 %v411
    %445 = vmatprep.subr.mxu0 0.0
    %446 = vmatpush1.msra.mxu0 %v412
    %447 = vmatprep.subr.mxu0 0.0
    %448 = vmatpush1.msra.mxu0 %v413
    %449 = vmatprep.subr.mxu0 0.0
    %450 = vmatpush1.msra.mxu0 %v414
    %451 = vmatprep.subr.mxu0 0.0
    %452 = vmatpush1.msra.mxu0 %v415
    %453 = vmatprep.subr.mxu0 0.0
    %454 = vmatpush1.msra.mxu0 %v416
    %455 = vmatprep.subr.mxu0 0.0
    %456 = vmatpush1.msra.mxu0 %v417
    %457 = vmatprep.subr.mxu0 0.0
    %458 = vmatpush1.msra.mxu0 0.0
    %459 = vmatprep.subr.mxu0 0.0
    %460 = vmatpush1.msra.mxu0 0.0
    %461 = vmatprep.subr.mxu0 0.0
    %462 = vmatpush1.msra.mxu0 0.0
    %463 = vmatprep.subr.mxu0 0.0
    %464 = vmatpush1.msra.mxu0 0.0
    %465 = vmatprep.subr.mxu0 0.0
    %466 = vmatpush1.msra.mxu0 0.0
    %467 = vmatprep.subr.mxu0 0.0
    %468 = vmatpush1.msra.mxu0 0.0
    %469 = vmatprep.subr.mxu0 0.0
    %470 = vmatpush1.msra.mxu0 0.0
    %471 = vmatprep.subr.mxu0 0.0
    %472 = vmatpush1.msra.mxu0 0.0
    %473 = vmatprep.subr.mxu0 0.0
    %474 = vmatpush1.msra.mxu0 0.0
    %475 = vmatprep.subr.mxu0 0.0
    %476 = vmatpush1.msra.mxu0 0.0
    %477 = vmatprep.subr.mxu0 0.0
    %478 = vmatpush1.msra.mxu0 0.0
    %479 = vmatprep.subr.mxu0 0.0
    %480 = vmatpush1.msra.mxu0 0.0
    %481 = vmatprep.subr.mxu0 0.0
    %482 = vmatpush1.msra.mxu0 0.0
    %483 = vmatprep.subr.mxu0 0.0
    %484 = vmatpush1.msra.mxu0 0.0
    %485 = vmatprep.subr.mxu0 0.0
    %486 = vmatpush1.msra.mxu0 0.0
    %487 = vmatprep.subr.mxu0 0.0
    %488 = vmatpush1.msra.mxu0 0.0
    %489 = vmatprep.mubr.f32.mxu0 0.0
    %490 = vmatmul.mubr.f32.gmra.mrb[0].mxu0 %v400
    %v491 = vpop.f32.mrb[0].mxu0
    %v492 = vadd.f32 %v423, %v491
    %v493 = vpop.f32.mrb[0].mxu0
    %494 = vdwg.mxu0
    %v495 = vtanh.pop %v492
    %v496 = vld [vmem:[#allocation12] sm:$0xff]
    %v497 = vld [vmem:[#allocation12 + $0x8] sm:$0xff]
    %v498 = vld [vmem:[#allocation12 + $0x10] sm:$0xff]
    %v499 = vld [vmem:[#allocation12 + $0x18] sm:$0xff]
    %v500 = vld [vmem:[#allocation12 + $0x20] sm:$0xff]
    %v501 = vld [vmem:[#allocation12 + $0x28] sm:$0xff]
    %v502 = vld [vmem:[#allocation12 + $0x30] sm:$0xff]
    %v503 = vld [vmem:[#allocation12 + $0x38] sm:$0xff]
    %v504 = vld [vmem:[#allocation12 + $0x40] sm:$0xff]
    %v505 = vld [vmem:[#allocation12 + $0x48] sm:$0xff]
    %v506 = vld [vmem:[#allocation12 + $0x50] sm:$0xff]
    %v507 = vld [vmem:[#allocation12 + $0x58] sm:$0xff]
    %v508 = vld [vmem:[#allocation12 + $0x60] sm:$0xff]
    %v509 = vld [vmem:[#allocation12 + $0x68] sm:$0xff]
    %v510 = vld [vmem:[#allocation12 + $0x70] sm:$0xff]
    %v511 = vld [vmem:[#allocation12 + $0x78] sm:$0xff]
    %v512 = vld [vmem:[#allocation14] sm:$0xff]
    %v513 = vld [vmem:[#allocation14 + $0x8] sm:$0xff]
    %v514 = vld [vmem:[#allocation14 + $0x10] sm:$0xff]
    %v515 = vld [vmem:[#allocation14 + $0x18] sm:$0xff]
    %v516 = vld [vmem:[#allocation14 + $0x20] sm:$0xff]
    %v517 = vld [vmem:[#allocation14 + $0x28] sm:$0xff]
    %v518 = vld [vmem:[#allocation14 + $0x30] sm:$0xff]
    %v519 = vld [vmem:[#allocation14 + $0x38] sm:$0xff]
    %v520 = vld [vmem:[#allocation14 + $0x40] sm:$0xff]
    %v521 = vld [vmem:[#allocation14 + $0x48] sm:$0xff]
    %v522 = vld [vmem:[#allocation14 + $0x50] sm:$0xff]
    %v523 = vld [vmem:[#allocation14 + $0x58] sm:$0xff]
    %v524 = vld [vmem:[#allocation14 + $0x60] sm:$0xff]
    %v525 = vld [vmem:[#allocation14 + $0x68] sm:$0xff]
    %v526 = vld [vmem:[#allocation14 + $0x70] sm:$0xff]
    %v527 = vld [vmem:[#allocation14 + $0x78] sm:$0xff]
    %v528 = vld [vmem:[#allocation14 + $0x80] sm:$0xff]
    %v529 = vld [vmem:[#allocation14 + $0x88] sm:$0xff]
    %v530 = vld [vmem:[#allocation14 + $0x90] sm:$0xff]
    %v531 = vld [vmem:[#allocation14 + $0x98] sm:$0xff]
    %v532 = vld [vmem:[#allocation14 + $0xa0] sm:$0xff]
    %v533 = vld [vmem:[#allocation14 + $0xa8] sm:$0xff]
    %v534 = vld [vmem:[#allocation14 + $0xb0] sm:$0xff]
    %v535 = vld [vmem:[#allocation14 + $0xb8] sm:$0xff]
    %v536 = vld [vmem:[#allocation14 + $0xc0] sm:$0xff]
    %v537 = vld [vmem:[#allocation14 + $0xc8] sm:$0xff]
    %v538 = vld [vmem:[#allocation14 + $0xd0] sm:$0xff]
    %v539 = vld [vmem:[#allocation14 + $0xd8] sm:$0xff]
    %v540 = vld [vmem:[#allocation14 + $0xe0] sm:$0xff]
    %v541 = vld [vmem:[#allocation14 + $0xe8] sm:$0xff]
    %v542 = vld [vmem:[#allocation14 + $0xf0] sm:$0xff]
    %v543 = vld [vmem:[#allocation14 + $0xf8] sm:$0xff]
    %v544 = vld [vmem:[#allocation2] sm:$0xff]
    %v545 = vld [vmem:[#allocation2 + $0x8] sm:$0xff]
    %546 = vmatprep.subr.mxu0 0.0
    %547 = vmatpush1.msra.mxu0 %v512
    %548 = vmatprep.subr.mxu0 0.0
    %549 = vmatpush1.msra.mxu0 %v513
    %550 = vmatprep.subr.mxu0 0.0
    %551 = vmatpush1.msra.mxu0 %v514
    %552 = vmatprep.subr.mxu0 0.0
    %553 = vmatpush1.msra.mxu0 %v515
    %554 = vmatprep.subr.mxu0 0.0
    %555 = vmatpush1.msra.mxu0 %v516
    %556 = vmatprep.subr.mxu0 0.0
    %557 = vmatpush1.msra.mxu0 %v517
    %558 = vmatprep.subr.mxu0 0.0
    %559 = vmatpush1.msra.mxu0 %v518
    %560 = vmatprep.subr.mxu0 0.0
    %561 = vmatpush1.msra.mxu0 %v519
    %562 = vmatprep.subr.mxu0 0.0
    %563 = vmatpush1.msra.mxu0 %v520
    %564 = vmatprep.subr.mxu0 0.0
    %565 = vmatpush1.msra.mxu0 %v521
    %566 = vmatprep.subr.mxu0 0.0
    %567 = vmatpush1.msra.mxu0 %v522
    %568 = vmatprep.subr.mxu0 0.0
    %569 = vmatpush1.msra.mxu0 %v523
    %570 = vmatprep.subr.mxu0 0.0
    %571 = vmatpush1.msra.mxu0 %v524
    %572 = vmatprep.subr.mxu0 0.0
    %573 = vmatpush1.msra.mxu0 %v525
    %574 = vmatprep.subr.mxu0 0.0
    %575 = vmatpush1.msra.mxu0 %v526
    %576 = vmatprep.subr.mxu0 0.0
    %577 = vmatpush1.msra.mxu0 %v527
    %578 = vmatprep.subr.mxu0 0.0
    %579 = vmatpush1.msra.mxu0 %v528
    %580 = vmatprep.subr.mxu0 0.0
    %581 = vmatpush1.msra.mxu0 %v529
    %582 = vmatprep.subr.mxu0 0.0
    %583 = vmatpush1.msra.mxu0 %v530
    %584 = vmatprep.subr.mxu0 0.0
    %585 = vmatpush1.msra.mxu0 %v531
    %586 = vmatprep.subr.mxu0 0.0
    %587 = vmatpush1.msra.mxu0 %v532
    %588 = vmatprep.subr.mxu0 0.0
    %589 = vmatpush1.msra.mxu0 %v533
    %590 = vmatprep.subr.mxu0 0.0
    %591 = vmatpush1.msra.mxu0 %v534
    %592 = vmatprep.subr.mxu0 0.0
    %593 = vmatpush1.msra.mxu0 %v535
    %594 = vmatprep.subr.mxu0 0.0
    %595 = vmatpush1.msra.mxu0 %v536
    %596 = vmatprep.subr.mxu0 0.0
    %597 = vmatpush1.msra.mxu0 %v537
    %598 = vmatprep.subr.mxu0 0.0
    %599 = vmatpush1.msra.mxu0 %v538
    %600 = vmatprep.subr.mxu0 0.0
    %601 = vmatpush1.msra.mxu0 %v539
    %602 = vmatprep.subr.mxu0 0.0
    %603 = vmatpush1.msra.mxu0 %v540
    %604 = vmatprep.subr.mxu0 0.0
    %605 = vmatpush1.msra.mxu0 %v541
    %606 = vmatprep.subr.mxu0 0.0
    %607 = vmatpush1.msra.mxu0 %v542
    %608 = vmatprep.subr.mxu0 0.0
    %609 = vmatpush1.msra.mxu0 %v543
    %610 = vmatprep.mubr.f32.mxu0 %v545
    %611 = vmatmul.mubr.f32.gmra.mrb[0].mxu0 %v544
    %v612 = vpop.f32.mrb[0].mxu0
    %v613 = vadd.f32 0.0, %v612
    %v614 = vpop.f32.mrb[0].mxu0
    %615 = vdwg.mxu0
    %616 = vmatprep.subr.mxu0 0.0
    %617 = vmatpush1.msra.mxu0 %v496
    %618 = vmatprep.subr.mxu0 0.0
    %619 = vmatpush1.msra.mxu0 %v497
    %620 = vmatprep.subr.mxu0 0.0
    %621 = vmatpush1.msra.mxu0 %v498
    %622 = vmatprep.subr.mxu0 0.0
    %623 = vmatpush1.msra.mxu0 %v499
    %624 = vmatprep.subr.mxu0 0.0
    %625 = vmatpush1.msra.mxu0 %v500
    %626 = vmatprep.subr.mxu0 0.0
    %627 = vmatpush1.msra.mxu0 %v501
    %628 = vmatprep.subr.mxu0 0.0
    %629 = vmatpush1.msra.mxu0 %v502
    %630 = vmatprep.subr.mxu0 0.0
    %631 = vmatpush1.msra.mxu0 %v503
    %632 = vmatprep.subr.mxu0 0.0
    %633 = vmatpush1.msra.mxu0 %v504
    %634 = vmatprep.subr.mxu0 0.0
    %635 = vmatpush1.msra.mxu0 %v505
    %636 = vmatprep.subr.mxu0 0.0
    %637 = vmatpush1.msra.mxu0 %v506
    %638 = vmatprep.subr.mxu0 0.0
    %639 = vmatpush1.msra.mxu0 %v507
    %640 = vmatprep.subr.mxu0 0.0
    %641 = vmatpush1.msra.mxu0 %v508
    %642 = vmatprep.subr.mxu0 0.0
    %643 = vmatpush1.msra.mxu0 %v509
    %644 = vmatprep.subr.mxu0 0.0
    %645 = vmatpush1.msra.mxu0 %v510
    %646 = vmatprep.subr.mxu0 0.0
    %647 = vmatpush1.msra.mxu0 %v511
    %648 = vmatprep.subr.mxu0 0.0
    %649 = vmatpush1.msra.mxu0 0.0
    %650 = vmatprep.subr.mxu0 0.0
    %651 = vmatpush1.msra.mxu0 0.0
    %652 = vmatprep.subr.mxu0 0.0
    %653 = vmatpush1.msra.mxu0 0.0
    %654 = vmatprep.subr.mxu0 0.0
    %655 = vmatpush1.msra.mxu0 0.0
    %656 = vmatprep.subr.mxu0 0.0
    %657 = vmatpush1.msra.mxu0 0.0
    %658 = vmatprep.subr.mxu0 0.0
    %659 = vmatpush1.msra.mxu0 0.0
    %660 = vmatprep.subr.mxu0 0.0
    %661 = vmatpush1.msra.mxu0 0.0
    %662 = vmatprep.subr.mxu0 0.0
    %663 = vmatpush1.msra.mxu0 0.0
    %664 = vmatprep.subr.mxu0 0.0
    %665 = vmatpush1.msra.mxu0 0.0
    %666 = vmatprep.subr.mxu0 0.0
    %667 = vmatpush1.msra.mxu0 0.0
    %668 = vmatprep.subr.mxu0 0.0
    %669 = vmatpush1.msra.mxu0 0.0
    %670 = vmatprep.subr.mxu0 0.0
    %671 = vmatpush1.msra.mxu0 0.0
    %672 = vmatprep.subr.mxu0 0.0
    %673 = vmatpush1.msra.mxu0 0.0
    %674 = vmatprep.subr.mxu0 0.0
    %675 = vmatpush1.msra.mxu0 0.0
    %676 = vmatprep.subr.mxu0 0.0
    %677 = vmatpush1.msra.mxu0 0.0
    %678 = vmatprep.subr.mxu0 0.0
    %679 = vmatpush1.msra.mxu0 0.0
    %680 = vmatprep.mubr.f32.mxu0 0.0
    %681 = vmatmul.mubr.f32.gmra.mrb[0].mxu0 %v495
    %v682 = vpop.f32.mrb[0].mxu0
    %v683 = vadd.f32 %v613, %v682
    %v684 = vpop.f32.mrb[0].mxu0
    %685 = vdwg.mxu0
    %v686 = vld [vmem:[%s7 + $0x3] sm:$0x1]
    %v688 = vlaneseq
    %v689 = vshrl.u32 %v688, 7
    %v690 = vsub.s32 0, %v689
    %v691 = vrot.slane %v686, %v690
    %v693 = vadd.f32 %v683, %v691
    %694 = vst [vmem:[#allocation15] sm:$0xff] %v693
    // Predicated region
    $region62: #{tpu_custom_call.1} parent=1 // pred_check
      _
    $region63: #{tpu_custom_call.1} parent=1 // pred_check_branch
      %696 = sbr.rel (0) target = $region65
    $region64: #{tpu_custom_call.1} parent=1 // pred_region
      %s698 = ssub.s32 128, 128
      %699 = vsyncadd [#allocation5], %s698
      %s701 = sshll.u32 [#allocation15], 4
      %s702 = int_to_ptr.vmem [resolvable:$true] %s701
      %704 = dma.vmem_to_hbm [thread:$0]  %s702, 128, %s8, [#allocation5]
    $region65: #{tpu_custom_call.1} parent=1 // pred_fallthru
      _
    // Predicated region
    $region66: #{tpu_custom_call.1} parent=1 // pred_check
      _
    $region67: #{tpu_custom_call.1} parent=1 // pred_check_branch
      %706 = sbr.rel (0) target = $region69
    $region68: #{tpu_custom_call.1} parent=1 // pred_region
      %707 = dma.done [#allocation5], 128
    $region69: #{tpu_custom_call.1} parent=1 // pred_fallthru
      _
    %708 = vsyncpa [#allocation4], 1
    %709 = vsyncpa [#allocation7], 1
    %710 = vsyncpa [#allocation10], 1
    %711 = vsyncpa [#allocation13], 1
    %712 = vsyncpa [#allocation5], 1

</llo_original>
